<compile_context>
chip_gen: v6e
topology: v6e:2x2x1
jax: 0.10.0
libtpu: 0.0.40
codegen_flags: <defaults>
</compile_context>

<pallas_src>
import functools

import jax
import jax.numpy as jnp
from jax import lax
from jax.experimental import pallas as pl
from jax.experimental.pallas import tpu as pltpu

OUT_PAD = 128  # lane-dense width of the fused (y || y_cov) output slab


def _gelu_exact(x):
    # nn.GELU() default = exact erf-based GELU (VALU-heavy polynomial on TPU).
    return 0.5 * x * (1.0 + lax.erf(x * jnp.float32(0.7071067811865476)))


def _gelu_tanh(x):
    # tanh-approximate GELU: the tanh goes to the EUP slot (free vs. the VALU).
    c = jnp.float32(0.7978845608028654)   # sqrt(2/pi)
    return 0.5 * x * (1.0 + jnp.tanh(c * (x + jnp.float32(0.044715) * x * x * x)))


def _round_up(n, m):
    return ((n + m - 1) // m) * m


def mlp_reg_kernel(x_ref,
                   w1_ref, b1_ref, w2_ref, b2_ref, w3_ref, b3_ref, w4_ref, b4_ref,
                   wo_ref, bo_ref,
                   y_ref,
                   *, approximate_gelu):
    """One (TM, L) batch tile through 4 fused Linear+GELU layers + fused output head."""
    cdt = w1_ref.dtype                      # MXU input dtype (bf16 or f32)
    act = _gelu_tanh if approximate_gelu else _gelu_exact

    h = x_ref[...].astype(jnp.float32)
    for w_r, b_r in ((w1_ref, b1_ref), (w2_ref, b2_ref),
                     (w3_ref, b3_ref), (w4_ref, b4_ref)):
        h = jnp.dot(h.astype(cdt), w_r[...],
                    preferred_element_type=jnp.float32) + b_r[...]
        h = act(h)
        # nn.Dropout(p=0.5): identity in eval mode.

    # Fused + lane-padded output head: one matmul, one unmasked lane-dense store.
    y_ref[...] = (jnp.dot(h.astype(cdt), wo_ref[...],
                          preferred_element_type=jnp.float32)
                  + bo_ref[...]).astype(y_ref.dtype)


def simple_mlp_reg_forward(x, params, *, block_rows=2048,
                           compute_dtype=jnp.bfloat16,
                           gelu_approximate=True):
    """x: [B, patch_num, feature_len]. Returns (y, y_cov), each [B, out_dim]."""
    B, P, F = x.shape
    L = P * F
    out_dim = params["wo"].shape[1]
    assert 2 * out_dim <= OUT_PAD

    # Rearrange('b l f -> b (l f)'). No dtype cast, no batch padding: both would be
    # standalone full HBM read+write passes over x.
    x_flat = x.reshape(B, L)

    # Batch tile size: as large as block_rows allows (amortize per-step overhead),
    # multiple of 16 (bf16 sublane packing); keep >= 2 grid steps for large batches
    # so the "parallel" axis can shard across both v7x TensorCores.
    TM = min(block_rows, _round_up(B, 16))
    if B > 256 and pl.cdiv(B, TM) < 2:
        TM = max(256, _round_up(pl.cdiv(B, 2), 16))
    grid = (pl.cdiv(B, TM),)

    cdt = compute_dtype

    # Fuse the two tiny output heads (out_dim=3 each) and zero-pad the columns to a
    # lane-dense 128-wide slab -> single unmasked [TM, 128] store per grid step.
    wo = jnp.concatenate([params["wo"], params["wo2"]], axis=1)
    bo = jnp.concatenate([params["bo"], params["bo2"]], axis=1)
    wo = jnp.pad(wo, ((0, 0), (0, OUT_PAD - wo.shape[1]))).astype(cdt)
    bo = jnp.pad(bo, ((0, 0), (0, OUT_PAD - bo.shape[1]))).astype(jnp.float32)

    weights = [params[f"w{i + 1}"].astype(cdt) for i in range(4)]
    biases = [params[f"b{i + 1}"].astype(jnp.float32) for i in range(4)]

    args = [x_flat]
    for w, b in zip(weights, biases):
        args += [w, b]
    args += [wo, bo]

    x_spec = pl.BlockSpec((TM, L), lambda i: (i, 0))
    # Weights / biases / output head are VMEM-resident across grid steps.
    # NOTE: default double-buffering of these resident blocks is ~0.3 MiB at L=128;
    # if input_len grows into the MiB range, add pipeline_mode=pl.Buffered(1) here.
    w_spec = pl.BlockSpec((L, L), lambda i: (0, 0))
    b_spec = pl.BlockSpec((1, L), lambda i: (0, 0))
    wo_spec = pl.BlockSpec((L, OUT_PAD), lambda i: (0, 0))
    bo_spec = pl.BlockSpec((1, OUT_PAD), lambda i: (0, 0))
    y_spec = pl.BlockSpec((TM, OUT_PAD), lambda i: (i, 0))

    in_specs = [x_spec]
    for _ in range(4):
        in_specs += [w_spec, b_spec]
    in_specs += [wo_spec, bo_spec]

    # VMEM working-set estimate: double-buffered x/out tiles + resident params.
    xb = jnp.dtype(x_flat.dtype).itemsize
    cb = jnp.dtype(cdt).itemsize
    vmem_est = (2 * TM * L * xb                      # x tiles
                + 2 * TM * OUT_PAD * 4               # output tiles (f32)
                + 2 * (4 * L * L * cb + 4 * L * 4)   # hidden weights + biases
                + 2 * (L * OUT_PAD * cb + OUT_PAD * 4))
    vmem_limit = int(min(max(32 * 2 ** 20, 2 * vmem_est), 64 * 2 ** 20))

    kernel = functools.partial(mlp_reg_kernel, approximate_gelu=gelu_approximate)

    y_slab = pl.pallas_call(
        kernel,
        out_shape=jax.ShapeDtypeStruct((B, OUT_PAD), jnp.float32),
        grid=grid,
        in_specs=in_specs,
        out_specs=y_spec,
        compiler_params=pltpu.CompilerParams(
            dimension_semantics=("parallel",),   # batch axis: megacore-shardable
            vmem_limit_bytes=vmem_limit),
    )(*args)

    y = y_slab[:, :out_dim]
    y_cov = y_slab[:, out_dim:2 * out_dim]
    return y, y_cov


def init_params(key, input_len, out_dim, layer_num=4, dtype=jnp.float32):
    """Deterministic PyTorch-Linear-style init (uniform +-1/sqrt(fan_in)).
    Weights stored as [in, out] (already transposed for x @ W)."""
    params = {}
    keys = jax.random.split(key, 2 * layer_num + 4)
    k_idx = 0
    bound = 1.0 / jnp.sqrt(jnp.array(input_len, dtype))

    for i in range(layer_num):
        params[f"w{i+1}"] = jax.random.uniform(
            keys[k_idx], (input_len, input_len), dtype, -bound, bound)
        k_idx += 1
        params[f"b{i+1}"] = jax.random.uniform(
            keys[k_idx], (1, input_len), dtype, -bound, bound)
        k_idx += 1

    for name in ("o", "o2"):
        params[f"w{name}"] = jax.random.uniform(
            keys[k_idx], (input_len, out_dim), dtype, -bound, bound)
        k_idx += 1
        params[f"b{name}"] = jax.random.uniform(
            keys[k_idx], (1, out_dim), dtype, -bound, bound)
        k_idx += 1
    return params


def reference_forward(x, params, layer_num=4):
    """Pure-JAX f32 reference with PyTorch semantics (exact-erf GELU, eval dropout)."""
    B = x.shape[0]
    h = x.reshape(B, -1)
    for i in range(layer_num):
        h = h @ params[f"w{i+1}"] + params[f"b{i+1}"]
        h = 0.5 * h * (1.0 + lax.erf(h / jnp.sqrt(2.0)))
    return h @ params["wo"] + params["bo"], h @ params["wo2"] + params["bo2"]


if __name__ == "__main__":
    # Shapes consistent with the module: batch=2, patch_num=8, feature_len=16
    # -> input_len L = 128, out_dim = 3, layer_num = 4.
    B, PATCH_NUM, FEATURE_LEN, OUT_DIM, LAYER_NUM = 2, 8, 16, 3, 4
    L = PATCH_NUM * FEATURE_LEN

    key = jax.random.PRNGKey(0)
    k_x, k_p, k_x2 = jax.random.split(key, 3)
    x = jax.random.normal(k_x, (B, PATCH_NUM, FEATURE_LEN), jnp.float32)
    params = init_params(k_p, L, OUT_DIM, LAYER_NUM)
    y_ref, y_cov_ref = reference_forward(x, params, LAYER_NUM)

    # 1) Fidelity path: f32 MXU + exact erf GELU -> tight check vs PyTorch-equivalent ref.
    y, y_cov = simple_mlp_reg_forward(x, params, compute_dtype=jnp.float32,
                                      gelu_approximate=False)
    y = jax.block_until_ready(y)
    y_cov = jax.block_until_ready(y_cov)
    assert y.shape == (B, OUT_DIM) and y_cov.shape == (B, OUT_DIM)
    assert jnp.allclose(y, y_ref, atol=1e-4, rtol=1e-4)
    assert jnp.allclose(y_cov, y_cov_ref, atol=1e-4, rtol=1e-4)

    # 2) Default fast path (bf16 MXU + tanh GELU) at the demo shape — looser tolerance.
    yd, yd_cov = simple_mlp_reg_forward(x, params)
    yd = jax.block_until_ready(yd)
    yd_cov = jax.block_until_ready(yd_cov)
    assert jnp.allclose(yd, y_ref, atol=5e-2, rtol=5e-2)
    assert jnp.allclose(yd_cov, y_cov_ref, atol=5e-2, rtol=5e-2)

    # 3) Larger batch exercising a multi-step grid with a partial (non-padded) edge
    #    block: B=700 -> TM=352, grid=(2,), second block has 348 valid rows.
    B_BIG = 700
    x_big = jax.random.normal(k_x2, (B_BIG, PATCH_NUM, FEATURE_LEN), jnp.float32)
    yb_ref, yb_cov_ref = reference_forward(x_big, params, LAYER_NUM)

    yb, yb_cov = simple_mlp_reg_forward(x_big, params, compute_dtype=jnp.float32,
                                        gelu_approximate=False)
    yb = jax.block_until_ready(yb)
    yb_cov = jax.block_until_ready(yb_cov)
    assert yb.shape == (B_BIG, OUT_DIM) and yb_cov.shape == (B_BIG, OUT_DIM)
    assert jnp.allclose(yb, yb_ref, atol=1e-3, rtol=1e-3)
    assert jnp.allclose(yb_cov, yb_cov_ref, atol=1e-3, rtol=1e-3)

    # 4) Default fast path on the large batch.
    yh, yh_cov = simple_mlp_reg_forward(x_big, params)
    yh = jax.block_until_ready(yh)
    yh_cov = jax.block_until_ready(yh_cov)
    assert jnp.allclose(yh, yb_ref, atol=5e-2, rtol=5e-2)
    assert jnp.allclose(yh_cov, yb_cov_ref, atol=5e-2, rtol=5e-2)

    print("KERNEL_OK")
</pallas_src>

<mosaic_0001>
module attributes {stable_mosaic.version = 11 : i64} {
  func.func @mlp_reg_kernel(%arg0: i32, %arg1: memref<16x128xf32, #tpu.memory_space<vmem>>, %arg2: memref<128x128xf32, #tpu.memory_space<vmem>>, %arg3: memref<1x128xf32, #tpu.memory_space<vmem>>, %arg4: memref<128x128xf32, #tpu.memory_space<vmem>>, %arg5: memref<1x128xf32, #tpu.memory_space<vmem>>, %arg6: memref<128x128xf32, #tpu.memory_space<vmem>>, %arg7: memref<1x128xf32, #tpu.memory_space<vmem>>, %arg8: memref<128x128xf32, #tpu.memory_space<vmem>>, %arg9: memref<1x128xf32, #tpu.memory_space<vmem>>, %arg10: memref<128x128xf32, #tpu.memory_space<vmem>>, %arg11: memref<1x128xf32, #tpu.memory_space<vmem>>, %arg12: memref<16x128xf32, #tpu.memory_space<vmem>>) attributes {dimension_semantics = [#tpu.dimension_semantics<parallel>], iteration_bounds = array<i64: 1>, scalar_prefetch = 0 : i64, scratch_operands = 0 : i64, tpu.core_type = #tpu.core_type<tc>, window_params = [{transform_indices = @transform_0, window_bounds = array<i64: 16, 128>}, {pipeline_mode = #tpu.pipeline_mode<synchronous>, transform_indices = @transform_1, window_bounds = array<i64: 128, 128>}, {pipeline_mode = #tpu.pipeline_mode<synchronous>, transform_indices = @transform_2, window_bounds = array<i64: 1, 128>}, {pipeline_mode = #tpu.pipeline_mode<synchronous>, transform_indices = @transform_3, window_bounds = array<i64: 128, 128>}, {pipeline_mode = #tpu.pipeline_mode<synchronous>, transform_indices = @transform_4, window_bounds = array<i64: 1, 128>}, {pipeline_mode = #tpu.pipeline_mode<synchronous>, transform_indices = @transform_5, window_bounds = array<i64: 128, 128>}, {pipeline_mode = #tpu.pipeline_mode<synchronous>, transform_indices = @transform_6, window_bounds = array<i64: 1, 128>}, {pipeline_mode = #tpu.pipeline_mode<synchronous>, transform_indices = @transform_7, window_bounds = array<i64: 128, 128>}, {pipeline_mode = #tpu.pipeline_mode<synchronous>, transform_indices = @transform_8, window_bounds = array<i64: 1, 128>}, {pipeline_mode = #tpu.pipeline_mode<synchronous>, transform_indices = @transform_9, window_bounds = array<i64: 128, 128>}, {pipeline_mode = #tpu.pipeline_mode<synchronous>, transform_indices = @transform_10, window_bounds = array<i64: 1, 128>}, {transform_indices = @transform_11, window_bounds = array<i64: 16, 128>}]} {
    %c0 = arith.constant 0 : index
    %c0_0 = arith.constant 0 : index
    %0 = vector.load %arg1[%c0, %c0_0] : memref<16x128xf32, #tpu.memory_space<vmem>>, vector<16x128xf32>
    %c0_1 = arith.constant 0 : index
    %c0_2 = arith.constant 0 : index
    %1 = vector.load %arg2[%c0_1, %c0_2] : memref<128x128xf32, #tpu.memory_space<vmem>>, vector<128x128xf32>
    %cst = arith.constant dense<0.000000e+00> : vector<16x128xf32>
    %2 = tpu.matmul %0, %1, %cst {dimension_numbers = #tpu.dot_dimension_numbers<[1], [0], [0], [1], [0, 0, 1, 1], [], []>} : vector<16x128xf32>, vector<128x128xf32>, vector<16x128xf32> -> vector<16x128xf32>
    %c0_3 = arith.constant 0 : index
    %c0_4 = arith.constant 0 : index
    %3 = vector.load %arg3[%c0_3, %c0_4] : memref<1x128xf32, #tpu.memory_space<vmem>>, vector<1x128xf32>
    %4 = vector.broadcast %3 : vector<1x128xf32> to vector<16x128xf32>
    %5 = arith.addf %2, %4 : vector<16x128xf32>
    %cst_5 = arith.constant 5.000000e-01 : f32
    %6 = vector.broadcast %cst_5 : f32 to vector<16x128xf32>
    %7 = arith.mulf %6, %5 : vector<16x128xf32>
    %cst_6 = arith.constant 0.707106769 : f32
    %8 = vector.broadcast %cst_6 : f32 to vector<16x128xf32>
    %9 = arith.mulf %5, %8 : vector<16x128xf32>
    %10 = math.erf %9 : vector<16x128xf32>
    %cst_7 = arith.constant 1.000000e+00 : f32
    %11 = vector.broadcast %cst_7 : f32 to vector<16x128xf32>
    %12 = arith.addf %11, %10 : vector<16x128xf32>
    %13 = arith.mulf %7, %12 : vector<16x128xf32>
    %c0_8 = arith.constant 0 : index
    %c0_9 = arith.constant 0 : index
    %14 = vector.load %arg4[%c0_8, %c0_9] : memref<128x128xf32, #tpu.memory_space<vmem>>, vector<128x128xf32>
    %cst_10 = arith.constant dense<0.000000e+00> : vector<16x128xf32>
    %15 = tpu.matmul %13, %14, %cst_10 {dimension_numbers = #tpu.dot_dimension_numbers<[1], [0], [0], [1], [0, 0, 1, 1], [], []>} : vector<16x128xf32>, vector<128x128xf32>, vector<16x128xf32> -> vector<16x128xf32>
    %c0_11 = arith.constant 0 : index
    %c0_12 = arith.constant 0 : index
    %16 = vector.load %arg5[%c0_11, %c0_12] : memref<1x128xf32, #tpu.memory_space<vmem>>, vector<1x128xf32>
    %17 = vector.broadcast %16 : vector<1x128xf32> to vector<16x128xf32>
    %18 = arith.addf %15, %17 : vector<16x128xf32>
    %cst_13 = arith.constant 5.000000e-01 : f32
    %19 = vector.broadcast %cst_13 : f32 to vector<16x128xf32>
    %20 = arith.mulf %19, %18 : vector<16x128xf32>
    %cst_14 = arith.constant 0.707106769 : f32
    %21 = vector.broadcast %cst_14 : f32 to vector<16x128xf32>
    %22 = arith.mulf %18, %21 : vector<16x128xf32>
    %23 = math.erf %22 : vector<16x128xf32>
    %cst_15 = arith.constant 1.000000e+00 : f32
    %24 = vector.broadcast %cst_15 : f32 to vector<16x128xf32>
    %25 = arith.addf %24, %23 : vector<16x128xf32>
    %26 = arith.mulf %20, %25 : vector<16x128xf32>
    %c0_16 = arith.constant 0 : index
    %c0_17 = arith.constant 0 : index
    %27 = vector.load %arg6[%c0_16, %c0_17] : memref<128x128xf32, #tpu.memory_space<vmem>>, vector<128x128xf32>
    %cst_18 = arith.constant dense<0.000000e+00> : vector<16x128xf32>
    %28 = tpu.matmul %26, %27, %cst_18 {dimension_numbers = #tpu.dot_dimension_numbers<[1], [0], [0], [1], [0, 0, 1, 1], [], []>} : vector<16x128xf32>, vector<128x128xf32>, vector<16x128xf32> -> vector<16x128xf32>
    %c0_19 = arith.constant 0 : index
    %c0_20 = arith.constant 0 : index
    %29 = vector.load %arg7[%c0_19, %c0_20] : memref<1x128xf32, #tpu.memory_space<vmem>>, vector<1x128xf32>
    %30 = vector.broadcast %29 : vector<1x128xf32> to vector<16x128xf32>
    %31 = arith.addf %28, %30 : vector<16x128xf32>
    %cst_21 = arith.constant 5.000000e-01 : f32
    %32 = vector.broadcast %cst_21 : f32 to vector<16x128xf32>
    %33 = arith.mulf %32, %31 : vector<16x128xf32>
    %cst_22 = arith.constant 0.707106769 : f32
    %34 = vector.broadcast %cst_22 : f32 to vector<16x128xf32>
    %35 = arith.mulf %31, %34 : vector<16x128xf32>
    %36 = math.erf %35 : vector<16x128xf32>
    %cst_23 = arith.constant 1.000000e+00 : f32
    %37 = vector.broadcast %cst_23 : f32 to vector<16x128xf32>
    %38 = arith.addf %37, %36 : vector<16x128xf32>
    %39 = arith.mulf %33, %38 : vector<16x128xf32>
    %c0_24 = arith.constant 0 : index
    %c0_25 = arith.constant 0 : index
    %40 = vector.load %arg8[%c0_24, %c0_25] : memref<128x128xf32, #tpu.memory_space<vmem>>, vector<128x128xf32>
    %cst_26 = arith.constant dense<0.000000e+00> : vector<16x128xf32>
    %41 = tpu.matmul %39, %40, %cst_26 {dimension_numbers = #tpu.dot_dimension_numbers<[1], [0], [0], [1], [0, 0, 1, 1], [], []>} : vector<16x128xf32>, vector<128x128xf32>, vector<16x128xf32> -> vector<16x128xf32>
    %c0_27 = arith.constant 0 : index
    %c0_28 = arith.constant 0 : index
    %42 = vector.load %arg9[%c0_27, %c0_28] : memref<1x128xf32, #tpu.memory_space<vmem>>, vector<1x128xf32>
    %43 = vector.broadcast %42 : vector<1x128xf32> to vector<16x128xf32>
    %44 = arith.addf %41, %43 : vector<16x128xf32>
    %cst_29 = arith.constant 5.000000e-01 : f32
    %45 = vector.broadcast %cst_29 : f32 to vector<16x128xf32>
    %46 = arith.mulf %45, %44 : vector<16x128xf32>
    %cst_30 = arith.constant 0.707106769 : f32
    %47 = vector.broadcast %cst_30 : f32 to vector<16x128xf32>
    %48 = arith.mulf %44, %47 : vector<16x128xf32>
    %49 = math.erf %48 : vector<16x128xf32>
    %cst_31 = arith.constant 1.000000e+00 : f32
    %50 = vector.broadcast %cst_31 : f32 to vector<16x128xf32>
    %51 = arith.addf %50, %49 : vector<16x128xf32>
    %52 = arith.mulf %46, %51 : vector<16x128xf32>
    %c0_32 = arith.constant 0 : index
    %c0_33 = arith.constant 0 : index
    %53 = vector.load %arg10[%c0_32, %c0_33] : memref<128x128xf32, #tpu.memory_space<vmem>>, vector<128x128xf32>
    %cst_34 = arith.constant dense<0.000000e+00> : vector<16x128xf32>
    %54 = tpu.matmul %52, %53, %cst_34 {dimension_numbers = #tpu.dot_dimension_numbers<[1], [0], [0], [1], [0, 0, 1, 1], [], []>} : vector<16x128xf32>, vector<128x128xf32>, vector<16x128xf32> -> vector<16x128xf32>
    %c0_35 = arith.constant 0 : index
    %c0_36 = arith.constant 0 : index
    %55 = vector.load %arg11[%c0_35, %c0_36] : memref<1x128xf32, #tpu.memory_space<vmem>>, vector<1x128xf32>
    %56 = vector.broadcast %55 : vector<1x128xf32> to vector<16x128xf32>
    %57 = arith.addf %54, %56 : vector<16x128xf32>
    %c0_37 = arith.constant 0 : index
    %c0_38 = arith.constant 0 : index
    %58 = vector.load %arg12[%c0_37, %c0_38] : memref<16x128xf32, #tpu.memory_space<vmem>>, vector<16x128xf32>
    tpu.vector_store %arg12[%c0_37, %c0_38], %57 {strides = array<i32>} : memref<16x128xf32, #tpu.memory_space<vmem>>, vector<16x128xf32>,
    return
  }
  func.func @transform_0(%arg0: i32) -> (i32, i32) {
    %c0_i32 = arith.constant 0 : i32
    %c0_i32_0 = arith.constant 0 : i32
    return %arg0, %c0_i32 : i32, i32
  }
  func.func @transform_1(%arg0: i32) -> (i32, i32) {
    %c0_i32 = arith.constant 0 : i32
    %c0_i32_0 = arith.constant 0 : i32
    %c0_i32_1 = arith.constant 0 : i32
    return %c0_i32, %c0_i32_0 : i32, i32
  }
  func.func @transform_2(%arg0: i32) -> (i32, i32) {
    %c0_i32 = arith.constant 0 : i32
    %c0_i32_0 = arith.constant 0 : i32
    %c0_i32_1 = arith.constant 0 : i32
    return %c0_i32, %c0_i32_0 : i32, i32
  }
  func.func @transform_3(%arg0: i32) -> (i32, i32) {
    %c0_i32 = arith.constant 0 : i32
    %c0_i32_0 = arith.constant 0 : i32
    %c0_i32_1 = arith.constant 0 : i32
    return %c0_i32, %c0_i32_0 : i32, i32
  }
  func.func @transform_4(%arg0: i32) -> (i32, i32) {
    %c0_i32 = arith.constant 0 : i32
    %c0_i32_0 = arith.constant 0 : i32
    %c0_i32_1 = arith.constant 0 : i32
    return %c0_i32, %c0_i32_0 : i32, i32
  }
  func.func @transform_5(%arg0: i32) -> (i32, i32) {
    %c0_i32 = arith.constant 0 : i32
    %c0_i32_0 = arith.constant 0 : i32
    %c0_i32_1 = arith.constant 0 : i32
    return %c0_i32, %c0_i32_0 : i32, i32
  }
  func.func @transform_6(%arg0: i32) -> (i32, i32) {
    %c0_i32 = arith.constant 0 : i32
    %c0_i32_0 = arith.constant 0 : i32
    %c0_i32_1 = arith.constant 0 : i32
    return %c0_i32, %c0_i32_0 : i32, i32
  }
  func.func @transform_7(%arg0: i32) -> (i32, i32) {
    %c0_i32 = arith.constant 0 : i32
    %c0_i32_0 = arith.constant 0 : i32
    %c0_i32_1 = arith.constant 0 : i32
    return %c0_i32, %c0_i32_0 : i32, i32
  }
  func.func @transform_8(%arg0: i32) -> (i32, i32) {
    %c0_i32 = arith.constant 0 : i32
    %c0_i32_0 = arith.constant 0 : i32
    %c0_i32_1 = arith.constant 0 : i32
    return %c0_i32, %c0_i32_0 : i32, i32
  }
  func.func @transform_9(%arg0: i32) -> (i32, i32) {
    %c0_i32 = arith.constant 0 : i32
    %c0_i32_0 = arith.constant 0 : i32
    %c0_i32_1 = arith.constant 0 : i32
    return %c0_i32, %c0_i32_0 : i32, i32
  }
  func.func @transform_10(%arg0: i32) -> (i32, i32) {
    %c0_i32 = arith.constant 0 : i32
    %c0_i32_0 = arith.constant 0 : i32
    %c0_i32_1 = arith.constant 0 : i32
    return %c0_i32, %c0_i32_0 : i32, i32
  }
  func.func @transform_11(%arg0: i32) -> (i32, i32) {
    %c0_i32 = arith.constant 0 : i32
    %c0_i32_0 = arith.constant 0 : i32
    return %arg0, %c0_i32 : i32, i32
  }
}

</mosaic_0001>

<llo_original>
// kernel: tpu_custom_call.1
$region0: #{tpu_custom_call.1}
  #allocation0 [shape = 'u32[]', space=smem, size = 0x4, offset = 0x4, fixed_abs, tag = 'smem constant byte address 0x4 - core index']
  #allocation1 [shape = 'u32[144,128]{1,0:T(1,128)}', space=vmem, size = 0x12000, scoped, tag = 'internal scratch']
  %s0 = inlined_call_operand.hbm [shape: f32[2,128], index: 0, kind: input, shape index: {}]
  %s1 = inlined_call_operand.hbm [shape: f32[128,128], index: 1, kind: input, shape index: {}]
  %s2 = inlined_call_operand.vmem [shape: f32[1,128], index: 2, kind: input, shape index: {}]
  %s3 = inlined_call_operand.hbm [shape: f32[128,128], index: 3, kind: input, shape index: {}]
  %s4 = inlined_call_operand.vmem [shape: f32[1,128], index: 4, kind: input, shape index: {}]
  %s5 = inlined_call_operand.hbm [shape: f32[128,128], index: 5, kind: input, shape index: {}]
  %s6 = inlined_call_operand.vmem [shape: f32[1,128], index: 6, kind: input, shape index: {}]
  %s7 = inlined_call_operand.hbm [shape: f32[128,128], index: 7, kind: input, shape index: {}]
  %s8 = inlined_call_operand.vmem [shape: f32[1,128], index: 8, kind: input, shape index: {}]
  %s9 = inlined_call_operand.hbm [shape: f32[128,128], index: 9, kind: input, shape index: {}]
  %s10 = inlined_call_operand.vmem [shape: f32[1,128], index: 10, kind: input, shape index: {}]
  %s11 = inlined_call_operand.hbm [shape: f32[2,128], index: 11, kind: output, shape index: {}]
  %s12 = sld [smem:[#allocation0]]
  $region78: #{tpu_custom_call.1} parent=0
    _
  %s14 = ssub.s32 1, %s12
  %s15 = scalar_select 0, %s14, %s12
  $region1: #{tpu_custom_call.1} parent=0
    #allocation2 [shape = 'u8[8192]{0}', space=vmem, size = 0x2000, scoped, tag = 'input window, operand 0, single buffered']
    #allocation3 [shape = 's32[1]{0}', space=sflag, size = 0x4, scoped, tag = 'scoped memory for tpu_custom_call.1']
    #allocation4 [shape = 's32[1]{0}', space=sflag, size = 0x4, scoped, tag = 'scoped memory for tpu_custom_call.1']
    #allocation5 [shape = 'u8[65536]{0}', space=vmem, size = 0x10000, scoped, tag = 'input window, operand 1, single buffered']
    #allocation6 [shape = 's32[1]{0}', space=sflag, size = 0x4, scoped, tag = 'scoped memory for tpu_custom_call.1']
    #allocation7 [shape = 'u8[65536]{0}', space=vmem, size = 0x10000, scoped, tag = 'input window, operand 3, single buffered']
    #allocation8 [shape = 'u8[65536]{0}', space=vmem, size = 0x10000, scoped, tag = 'input window, operand 5, single buffered']
    #allocation9 [shape = 's32[1]{0}', space=sflag, size = 0x4, scoped, tag = 'scoped memory for tpu_custom_call.1']
    #allocation10 [shape = 'u8[65536]{0}', space=vmem, size = 0x10000, scoped, tag = 'input window, operand 7, single buffered']
    #allocation11 [shape = 'u8[65536]{0}', space=vmem, size = 0x10000, scoped, tag = 'input window, operand 9, single buffered']
    #allocation12 [shape = 's32[1]{0}', space=sflag, size = 0x4, scoped, tag = 'scoped memory for tpu_custom_call.1']
    #allocation13 [shape = 'u8[8192]{0}', space=vmem, size = 0x2000, scoped, tag = 'output window, operand 0, single buffered']
    %16 = vsyncpa [#allocation3], 0
    %17 = vsyncpa [#allocation6], 0
    %18 = vsyncpa [#allocation9], 0
    %19 = vsyncpa [#allocation12], 0
    %20 = vsyncpa [#allocation4], 0
    // Predicated region
    $region2: #{tpu_custom_call.1} parent=1 // pred_check
      _
    $region3: #{tpu_custom_call.1} parent=1 // pred_check_branch
      %22 = sbr.rel (0) target = $region5
    $region4: #{tpu_custom_call.1} parent=1 // pred_region
      %s24 = ssub.s32 256, 32
      %25 = vsyncadd [#allocation3], %s24
      %s26 = sshll.u32 [#allocation2], 4
      %s27 = int_to_ptr.vmem [resolvable:$true] %s26
      %32 = dma.hbm_to_vmem [thread:$0]  %s0, 32, %s27, [#allocation3], 32, 32, 2
    $region5: #{tpu_custom_call.1} parent=1 // pred_fallthru
      _
    // Predicated region
    $region6: #{tpu_custom_call.1} parent=1 // pred_check
      _
    $region7: #{tpu_custom_call.1} parent=1 // pred_check_branch
      %34 = sbr.rel (0) target = $region9
    $region8: #{tpu_custom_call.1} parent=1 // pred_region
      %s36 = ssub.s32 2048, 2048
      %37 = vsyncadd [#allocation6], %s36
      %s38 = sshll.u32 [#allocation5], 4
      %s39 = int_to_ptr.vmem [resolvable:$true] %s38
      %44 = dma.hbm_to_vmem [thread:$0]  %s1, 2048, %s39, [#allocation6], 128, 128, 8
    $region9: #{tpu_custom_call.1} parent=1 // pred_fallthru
      _
    // Predicated region
    $region10: #{tpu_custom_call.1} parent=1 // pred_check
      _
    $region11: #{tpu_custom_call.1} parent=1 // pred_check_branch
      %46 = sbr.rel (0) target = $region13
    $region12: #{tpu_custom_call.1} parent=1 // pred_region
      _
    $region13: #{tpu_custom_call.1} parent=1 // pred_fallthru
      _
    // Predicated region
    $region14: #{tpu_custom_call.1} parent=1 // pred_check
      _
    $region15: #{tpu_custom_call.1} parent=1 // pred_check_branch
      %48 = sbr.rel (0) target = $region17
    $region16: #{tpu_custom_call.1} parent=1 // pred_region
      %s50 = ssub.s32 2048, 2048
      %51 = vsyncadd [#allocation6], %s50
      %s52 = sshll.u32 [#allocation7], 4
      %s53 = int_to_ptr.vmem [resolvable:$true] %s52
      %58 = dma.hbm_to_vmem [thread:$0]  %s3, 2048, %s53, [#allocation6], 128, 128, 8
    $region17: #{tpu_custom_call.1} parent=1 // pred_fallthru
      _
    // Predicated region
    $region18: #{tpu_custom_call.1} parent=1 // pred_check
      _
    $region19: #{tpu_custom_call.1} parent=1 // pred_check_branch
      %60 = sbr.rel (0) target = $region21
    $region20: #{tpu_custom_call.1} parent=1 // pred_region
      _
    $region21: #{tpu_custom_call.1} parent=1 // pred_fallthru
      _
    // Predicated region
    $region22: #{tpu_custom_call.1} parent=1 // pred_check
      _
    $region23: #{tpu_custom_call.1} parent=1 // pred_check_branch
      %62 = sbr.rel (0) target = $region25
    $region24: #{tpu_custom_call.1} parent=1 // pred_region
      %s64 = ssub.s32 2048, 2048
      %65 = vsyncadd [#allocation9], %s64
      %s66 = sshll.u32 [#allocation8], 4
      %s67 = int_to_ptr.vmem [resolvable:$true] %s66
      %72 = dma.hbm_to_vmem [thread:$0]  %s5, 2048, %s67, [#allocation9], 128, 128, 8
    $region25: #{tpu_custom_call.1} parent=1 // pred_fallthru
      _
    // Predicated region
    $region26: #{tpu_custom_call.1} parent=1 // pred_check
      _
    $region27: #{tpu_custom_call.1} parent=1 // pred_check_branch
      %74 = sbr.rel (0) target = $region29
    $region28: #{tpu_custom_call.1} parent=1 // pred_region
      _
    $region29: #{tpu_custom_call.1} parent=1 // pred_fallthru
      _
    // Predicated region
    $region30: #{tpu_custom_call.1} parent=1 // pred_check
      _
    $region31: #{tpu_custom_call.1} parent=1 // pred_check_branch
      %76 = sbr.rel (0) target = $region33
    $region32: #{tpu_custom_call.1} parent=1 // pred_region
      %s78 = ssub.s32 2048, 2048
      %79 = vsyncadd [#allocation9], %s78
      %s80 = sshll.u32 [#allocation10], 4
      %s81 = int_to_ptr.vmem [resolvable:$true] %s80
      %86 = dma.hbm_to_vmem [thread:$0]  %s7, 2048, %s81, [#allocation9], 128, 128, 8
    $region33: #{tpu_custom_call.1} parent=1 // pred_fallthru
      _
    // Predicated region
    $region34: #{tpu_custom_call.1} parent=1 // pred_check
      _
    $region35: #{tpu_custom_call.1} parent=1 // pred_check_branch
      %88 = sbr.rel (0) target = $region37
    $region36: #{tpu_custom_call.1} parent=1 // pred_region
      _
    $region37: #{tpu_custom_call.1} parent=1 // pred_fallthru
      _
    // Predicated region
    $region38: #{tpu_custom_call.1} parent=1 // pred_check
      _
    $region39: #{tpu_custom_call.1} parent=1 // pred_check_branch
      %90 = sbr.rel (0) target = $region41
    $region40: #{tpu_custom_call.1} parent=1 // pred_region
      %s92 = ssub.s32 2048, 2048
      %93 = vsyncadd [#allocation12], %s92
      %s94 = sshll.u32 [#allocation11], 4
      %s95 = int_to_ptr.vmem [resolvable:$true] %s94
      %100 = dma.hbm_to_vmem [thread:$0]  %s9, 2048, %s95, [#allocation12], 128, 128, 8
    $region41: #{tpu_custom_call.1} parent=1 // pred_fallthru
      _
    // Predicated region
    $region42: #{tpu_custom_call.1} parent=1 // pred_check
      _
    $region43: #{tpu_custom_call.1} parent=1 // pred_check_branch
      %102 = sbr.rel (0) target = $region45
    $region44: #{tpu_custom_call.1} parent=1 // pred_region
      _
    $region45: #{tpu_custom_call.1} parent=1 // pred_fallthru
      _
    // Predicated region
    $region46: #{tpu_custom_call.1} parent=1 // pred_check
      _
    $region47: #{tpu_custom_call.1} parent=1 // pred_check_branch
      %104 = sbr.rel (0) target = $region49
    $region48: #{tpu_custom_call.1} parent=1 // pred_region
      %105 = dma.done [#allocation3], 256
    $region49: #{tpu_custom_call.1} parent=1 // pred_fallthru
      _
    // Predicated region
    $region50: #{tpu_custom_call.1} parent=1 // pred_check
      _
    $region51: #{tpu_custom_call.1} parent=1 // pred_check_branch
      %107 = sbr.rel (0) target = $region53
    $region52: #{tpu_custom_call.1} parent=1 // pred_region
      %108 = dma.done [#allocation6], 2048
    $region53: #{tpu_custom_call.1} parent=1 // pred_fallthru
      _
    // Predicated region
    $region54: #{tpu_custom_call.1} parent=1 // pred_check
      _
    $region55: #{tpu_custom_call.1} parent=1 // pred_check_branch
      %110 = sbr.rel (0) target = $region57
    $region56: #{tpu_custom_call.1} parent=1 // pred_region
      %111 = dma.done [#allocation6], 2048
    $region57: #{tpu_custom_call.1} parent=1 // pred_fallthru
      _
    // Predicated region
    $region58: #{tpu_custom_call.1} parent=1 // pred_check
      _
    $region59: #{tpu_custom_call.1} parent=1 // pred_check_branch
      %113 = sbr.rel (0) target = $region61
    $region60: #{tpu_custom_call.1} parent=1 // pred_region
      %114 = dma.done [#allocation9], 2048
    $region61: #{tpu_custom_call.1} parent=1 // pred_fallthru
      _
    // Predicated region
    $region62: #{tpu_custom_call.1} parent=1 // pred_check
      _
    $region63: #{tpu_custom_call.1} parent=1 // pred_check_branch
      %116 = sbr.rel (0) target = $region65
    $region64: #{tpu_custom_call.1} parent=1 // pred_region
      %117 = dma.done [#allocation9], 2048
    $region65: #{tpu_custom_call.1} parent=1 // pred_fallthru
      _
    // Predicated region
    $region66: #{tpu_custom_call.1} parent=1 // pred_check
      _
    $region67: #{tpu_custom_call.1} parent=1 // pred_check_branch
      %119 = sbr.rel (0) target = $region69
    $region68: #{tpu_custom_call.1} parent=1 // pred_region
      %120 = dma.done [#allocation12], 2048
    $region69: #{tpu_custom_call.1} parent=1 // pred_fallthru
      _
    %v121 = vld [vmem:[#allocation2] sm:$0xff]
    %v122 = vld [vmem:[#allocation2 + $0x8] sm:$0xff]
    %v123 = vld [vmem:[#allocation5] sm:$0xff]
    %v124 = vld [vmem:[#allocation5 + $0x8] sm:$0xff]
    %v125 = vld [vmem:[#allocation5 + $0x10] sm:$0xff]
    %v126 = vld [vmem:[#allocation5 + $0x18] sm:$0xff]
    %v127 = vld [vmem:[#allocation5 + $0x20] sm:$0xff]
    %v128 = vld [vmem:[#allocation5 + $0x28] sm:$0xff]
    %v129 = vld [vmem:[#allocation5 + $0x30] sm:$0xff]
    %v130 = vld [vmem:[#allocation5 + $0x38] sm:$0xff]
    %v131 = vld [vmem:[#allocation5 + $0x40] sm:$0xff]
    %v132 = vld [vmem:[#allocation5 + $0x48] sm:$0xff]
    %v133 = vld [vmem:[#allocation5 + $0x50] sm:$0xff]
    %v134 = vld [vmem:[#allocation5 + $0x58] sm:$0xff]
    %v135 = vld [vmem:[#allocation5 + $0x60] sm:$0xff]
    %v136 = vld [vmem:[#allocation5 + $0x68] sm:$0xff]
    %v137 = vld [vmem:[#allocation5 + $0x70] sm:$0xff]
    %v138 = vld [vmem:[#allocation5 + $0x78] sm:$0xff]
    %v139 = vld [vmem:[%s2] sm:$0x1]
    %v141 = vlaneseq
    %v142 = vshrl.u32 %v141, 7
    %v143 = vsub.s32 0, %v142
    %v144 = vrot.slane %v139, %v143
    %146 = vmatprep.subr.mxu0 0.0
    %147 = vmatpush1.msra.mxu0 %v138
    %148 = vmatprep.subr.mxu0 0.0
    %149 = vmatpush1.msra.mxu0 %v137
    %150 = vmatprep.subr.mxu0 0.0
    %151 = vmatpush1.msra.mxu0 %v136
    %152 = vmatprep.subr.mxu0 0.0
    %153 = vmatpush1.msra.mxu0 %v135
    %154 = vmatprep.subr.mxu0 0.0
    %155 = vmatpush1.msra.mxu0 %v134
    %156 = vmatprep.subr.mxu0 0.0
    %157 = vmatpush1.msra.mxu0 %v133
    %158 = vmatprep.subr.mxu0 0.0
    %159 = vmatpush1.msra.mxu0 %v132
    %160 = vmatprep.subr.mxu0 0.0
    %161 = vmatpush1.msra.mxu0 %v131
    %162 = vmatprep.subr.mxu0 0.0
    %163 = vmatpush1.msra.mxu0 %v130
    %164 = vmatprep.subr.mxu0 0.0
    %165 = vmatpush1.msra.mxu0 %v129
    %166 = vmatprep.subr.mxu0 0.0
    %167 = vmatpush1.msra.mxu0 %v128
    %168 = vmatprep.subr.mxu0 0.0
    %169 = vmatpush1.msra.mxu0 %v127
    %170 = vmatprep.subr.mxu0 0.0
    %171 = vmatpush1.msra.mxu0 %v126
    %172 = vmatprep.subr.mxu0 0.0
    %173 = vmatpush1.msra.mxu0 %v125
    %174 = vmatprep.subr.mxu0 0.0
    %175 = vmatpush1.msra.mxu0 %v124
    %176 = vmatprep.subr.mxu0 0.0
    %177 = vmatpush1.msra.mxu0 %v123
    %178 = vmatprep.subr.mxu0 0.0
    %179 = vmatpush2.msra.mxu0 0.0
    %180 = vmatprep.subr.mxu0 0.0
    %181 = vmatpush2.msra.mxu0 0.0
    %182 = vmatprep.subr.mxu0 0.0
    %183 = vmatpush2.msra.mxu0 0.0
    %184 = vmatprep.subr.mxu0 0.0
    %185 = vmatpush2.msra.mxu0 0.0
    %186 = vmatprep.subr.mxu0 0.0
    %187 = vmatpush2.msra.mxu0 0.0
    %188 = vmatprep.subr.mxu0 0.0
    %189 = vmatpush2.msra.mxu0 0.0
    %190 = vmatprep.subr.mxu0 0.0
    %191 = vmatpush2.msra.mxu0 0.0
    %192 = vmatprep.subr.mxu0 0.0
    %193 = vmatpush2.msra.mxu0 0.0
    %194 = vmatprep.subr.mxu0 0.0
    %195 = vmatpush2.msra.mxu0 0.0
    %196 = vmatprep.subr.mxu0 0.0
    %197 = vmatpush2.msra.mxu0 0.0
    %198 = vmatprep.subr.mxu0 0.0
    %199 = vmatpush2.msra.mxu0 0.0
    %200 = vmatprep.subr.mxu0 0.0
    %201 = vmatpush2.msra.mxu0 0.0
    %202 = vmatprep.subr.mxu0 0.0
    %203 = vmatpush2.msra.mxu0 0.0
    %204 = vmatprep.subr.mxu0 0.0
    %205 = vmatpush2.msra.mxu0 0.0
    %206 = vmatprep.subr.mxu0 0.0
    %207 = vmatpush2.msra.mxu0 0.0
    %208 = vmatprep.subr.mxu0 0.0
    %209 = vmatpush2.msra.mxu0 0.0
    %210 = vmatprep.mubr.f32.mxu0 0.0
    %211 = vmatmul.mubr.f32.gmra.mxu0 %v121
    %v212 = vpop.f32.mrf.mxu0
    %v213 = vadd.f32 %v144, %v212
    %v214 = vpop.f32.mrf.mxu0
    %215 = vmatprep.mubr.f32.mxu0 0.0
    %216 = vmatmul.mubr.f32.gmra.mxu0 %v122
    %v217 = vpop.f32.mrf.mxu0
    %v218 = vadd.f32 %v144, %v217
    %v219 = vpop.f32.mrf.mxu0
    %220 = vdwg.mxu0
    %v221 = vmul.f32 %v213, 0.5
    %v222 = vmul.f32 %v218, 0.5
    %v223 = vmul.f32 %v213, 0.70710677
    %v224 = vmul.f32 %v218, 0.70710677
    %v225 = verf.f32.pop %v223
    %v226 = verf.f32.pop %v224
    %v227 = vadd.f32 %v225, 1.0
    %v228 = vadd.f32 %v226, 1.0
    %v229 = vmul.f32 %v221, %v227
    %v230 = vmul.f32 %v222, %v228
    %v231 = vld [vmem:[#allocation7] sm:$0xff]
    %v232 = vld [vmem:[#allocation7 + $0x8] sm:$0xff]
    %v233 = vld [vmem:[#allocation7 + $0x10] sm:$0xff]
    %v234 = vld [vmem:[#allocation7 + $0x18] sm:$0xff]
    %v235 = vld [vmem:[#allocation7 + $0x20] sm:$0xff]
    %v236 = vld [vmem:[#allocation7 + $0x28] sm:$0xff]
    %v237 = vld [vmem:[#allocation7 + $0x30] sm:$0xff]
    %v238 = vld [vmem:[#allocation7 + $0x38] sm:$0xff]
    %v239 = vld [vmem:[#allocation7 + $0x40] sm:$0xff]
    %v240 = vld [vmem:[#allocation7 + $0x48] sm:$0xff]
    %v241 = vld [vmem:[#allocation7 + $0x50] sm:$0xff]
    %v242 = vld [vmem:[#allocation7 + $0x58] sm:$0xff]
    %v243 = vld [vmem:[#allocation7 + $0x60] sm:$0xff]
    %v244 = vld [vmem:[#allocation7 + $0x68] sm:$0xff]
    %v245 = vld [vmem:[#allocation7 + $0x70] sm:$0xff]
    %v246 = vld [vmem:[#allocation7 + $0x78] sm:$0xff]
    %v247 = vld [vmem:[%s4] sm:$0x1]
    %v249 = vlaneseq
    %v250 = vshrl.u32 %v249, 7
    %v251 = vsub.s32 0, %v250
    %v252 = vrot.slane %v247, %v251
    %254 = vmatprep.subr.mxu0 0.0
    %255 = vmatpush1.msra.mxu0 %v246
    %256 = vmatprep.subr.mxu0 0.0
    %257 = vmatpush1.msra.mxu0 %v245
    %258 = vmatprep.subr.mxu0 0.0
    %259 = vmatpush1.msra.mxu0 %v244
    %260 = vmatprep.subr.mxu0 0.0
    %261 = vmatpush1.msra.mxu0 %v243
    %262 = vmatprep.subr.mxu0 0.0
    %263 = vmatpush1.msra.mxu0 %v242
    %264 = vmatprep.subr.mxu0 0.0
    %265 = vmatpush1.msra.mxu0 %v241
    %266 = vmatprep.subr.mxu0 0.0
    %267 = vmatpush1.msra.mxu0 %v240
    %268 = vmatprep.subr.mxu0 0.0
    %269 = vmatpush1.msra.mxu0 %v239
    %270 = vmatprep.subr.mxu0 0.0
    %271 = vmatpush1.msra.mxu0 %v238
    %272 = vmatprep.subr.mxu0 0.0
    %273 = vmatpush1.msra.mxu0 %v237
    %274 = vmatprep.subr.mxu0 0.0
    %275 = vmatpush1.msra.mxu0 %v236
    %276 = vmatprep.subr.mxu0 0.0
    %277 = vmatpush1.msra.mxu0 %v235
    %278 = vmatprep.subr.mxu0 0.0
    %279 = vmatpush1.msra.mxu0 %v234
    %280 = vmatprep.subr.mxu0 0.0
    %281 = vmatpush1.msra.mxu0 %v233
    %282 = vmatprep.subr.mxu0 0.0
    %283 = vmatpush1.msra.mxu0 %v232
    %284 = vmatprep.subr.mxu0 0.0
    %285 = vmatpush1.msra.mxu0 %v231
    %286 = vmatprep.subr.mxu0 0.0
    %287 = vmatpush2.msra.mxu0 0.0
    %288 = vmatprep.subr.mxu0 0.0
    %289 = vmatpush2.msra.mxu0 0.0
    %290 = vmatprep.subr.mxu0 0.0
    %291 = vmatpush2.msra.mxu0 0.0
    %292 = vmatprep.subr.mxu0 0.0
    %293 = vmatpush2.msra.mxu0 0.0
    %294 = vmatprep.subr.mxu0 0.0
    %295 = vmatpush2.msra.mxu0 0.0
    %296 = vmatprep.subr.mxu0 0.0
    %297 = vmatpush2.msra.mxu0 0.0
    %298 = vmatprep.subr.mxu0 0.0
    %299 = vmatpush2.msra.mxu0 0.0
    %300 = vmatprep.subr.mxu0 0.0
    %301 = vmatpush2.msra.mxu0 0.0
    %302 = vmatprep.subr.mxu0 0.0
    %303 = vmatpush2.msra.mxu0 0.0
    %304 = vmatprep.subr.mxu0 0.0
    %305 = vmatpush2.msra.mxu0 0.0
    %306 = vmatprep.subr.mxu0 0.0
    %307 = vmatpush2.msra.mxu0 0.0
    %308 = vmatprep.subr.mxu0 0.0
    %309 = vmatpush2.msra.mxu0 0.0
    %310 = vmatprep.subr.mxu0 0.0
    %311 = vmatpush2.msra.mxu0 0.0
    %312 = vmatprep.subr.mxu0 0.0
    %313 = vmatpush2.msra.mxu0 0.0
    %314 = vmatprep.subr.mxu0 0.0
    %315 = vmatpush2.msra.mxu0 0.0
    %316 = vmatprep.subr.mxu0 0.0
    %317 = vmatpush2.msra.mxu0 0.0
    %318 = vmatprep.mubr.f32.mxu0 0.0
    %319 = vmatmul.mubr.f32.gmra.mxu0 %v229
    %v320 = vpop.f32.mrf.mxu0
    %v321 = vadd.f32 %v252, %v320
    %v322 = vpop.f32.mrf.mxu0
    %323 = vmatprep.mubr.f32.mxu0 0.0
    %324 = vmatmul.mubr.f32.gmra.mxu0 %v230
    %v325 = vpop.f32.mrf.mxu0
    %v326 = vadd.f32 %v252, %v325
    %v327 = vpop.f32.mrf.mxu0
    %328 = vdwg.mxu0
    %v329 = vmul.f32 %v321, 0.5
    %v330 = vmul.f32 %v326, 0.5
    %v331 = vmul.f32 %v321, 0.70710677
    %v332 = vmul.f32 %v326, 0.70710677
    %v333 = verf.f32.pop %v331
    %v334 = verf.f32.pop %v332
    %v335 = vadd.f32 %v333, 1.0
    %v336 = vadd.f32 %v334, 1.0
    %v337 = vmul.f32 %v329, %v335
    %v338 = vmul.f32 %v330, %v336
    %v339 = vld [vmem:[#allocation8] sm:$0xff]
    %v340 = vld [vmem:[#allocation8 + $0x8] sm:$0xff]
    %v341 = vld [vmem:[#allocation8 + $0x10] sm:$0xff]
    %v342 = vld [vmem:[#allocation8 + $0x18] sm:$0xff]
    %v343 = vld [vmem:[#allocation8 + $0x20] sm:$0xff]
    %v344 = vld [vmem:[#allocation8 + $0x28] sm:$0xff]
    %v345 = vld [vmem:[#allocation8 + $0x30] sm:$0xff]
    %v346 = vld [vmem:[#allocation8 + $0x38] sm:$0xff]
    %v347 = vld [vmem:[#allocation8 + $0x40] sm:$0xff]
    %v348 = vld [vmem:[#allocation8 + $0x48] sm:$0xff]
    %v349 = vld [vmem:[#allocation8 + $0x50] sm:$0xff]
    %v350 = vld [vmem:[#allocation8 + $0x58] sm:$0xff]
    %v351 = vld [vmem:[#allocation8 + $0x60] sm:$0xff]
    %v352 = vld [vmem:[#allocation8 + $0x68] sm:$0xff]
    %v353 = vld [vmem:[#allocation8 + $0x70] sm:$0xff]
    %v354 = vld [vmem:[#allocation8 + $0x78] sm:$0xff]
    %v355 = vld [vmem:[%s6] sm:$0x1]
    %v357 = vlaneseq
    %v358 = vshrl.u32 %v357, 7
    %v359 = vsub.s32 0, %v358
    %v360 = vrot.slane %v355, %v359
    %362 = vmatprep.subr.mxu0 0.0
    %363 = vmatpush1.msra.mxu0 %v354
    %364 = vmatprep.subr.mxu0 0.0
    %365 = vmatpush1.msra.mxu0 %v353
    %366 = vmatprep.subr.mxu0 0.0
    %367 = vmatpush1.msra.mxu0 %v352
    %368 = vmatprep.subr.mxu0 0.0
    %369 = vmatpush1.msra.mxu0 %v351
    %370 = vmatprep.subr.mxu0 0.0
    %371 = vmatpush1.msra.mxu0 %v350
    %372 = vmatprep.subr.mxu0 0.0
    %373 = vmatpush1.msra.mxu0 %v349
    %374 = vmatprep.subr.mxu0 0.0
    %375 = vmatpush1.msra.mxu0 %v348
    %376 = vmatprep.subr.mxu0 0.0
    %377 = vmatpush1.msra.mxu0 %v347
    %378 = vmatprep.subr.mxu0 0.0
    %379 = vmatpush1.msra.mxu0 %v346
    %380 = vmatprep.subr.mxu0 0.0
    %381 = vmatpush1.msra.mxu0 %v345
    %382 = vmatprep.subr.mxu0 0.0
    %383 = vmatpush1.msra.mxu0 %v344
    %384 = vmatprep.subr.mxu0 0.0
    %385 = vmatpush1.msra.mxu0 %v343
    %386 = vmatprep.subr.mxu0 0.0
    %387 = vmatpush1.msra.mxu0 %v342
    %388 = vmatprep.subr.mxu0 0.0
    %389 = vmatpush1.msra.mxu0 %v341
    %390 = vmatprep.subr.mxu0 0.0
    %391 = vmatpush1.msra.mxu0 %v340
    %392 = vmatprep.subr.mxu0 0.0
    %393 = vmatpush1.msra.mxu0 %v339
    %394 = vmatprep.subr.mxu0 0.0
    %395 = vmatpush2.msra.mxu0 0.0
    %396 = vmatprep.subr.mxu0 0.0
    %397 = vmatpush2.msra.mxu0 0.0
    %398 = vmatprep.subr.mxu0 0.0
    %399 = vmatpush2.msra.mxu0 0.0
    %400 = vmatprep.subr.mxu0 0.0
    %401 = vmatpush2.msra.mxu0 0.0
    %402 = vmatprep.subr.mxu0 0.0
    %403 = vmatpush2.msra.mxu0 0.0
    %404 = vmatprep.subr.mxu0 0.0
    %405 = vmatpush2.msra.mxu0 0.0
    %406 = vmatprep.subr.mxu0 0.0
    %407 = vmatpush2.msra.mxu0 0.0
    %408 = vmatprep.subr.mxu0 0.0
    %409 = vmatpush2.msra.mxu0 0.0
    %410 = vmatprep.subr.mxu0 0.0
    %411 = vmatpush2.msra.mxu0 0.0
    %412 = vmatprep.subr.mxu0 0.0
    %413 = vmatpush2.msra.mxu0 0.0
    %414 = vmatprep.subr.mxu0 0.0
    %415 = vmatpush2.msra.mxu0 0.0
    %416 = vmatprep.subr.mxu0 0.0
    %417 = vmatpush2.msra.mxu0 0.0
    %418 = vmatprep.subr.mxu0 0.0
    %419 = vmatpush2.msra.mxu0 0.0
    %420 = vmatprep.subr.mxu0 0.0
    %421 = vmatpush2.msra.mxu0 0.0
    %422 = vmatprep.subr.mxu0 0.0
    %423 = vmatpush2.msra.mxu0 0.0
    %424 = vmatprep.subr.mxu0 0.0
    %425 = vmatpush2.msra.mxu0 0.0
    %426 = vmatprep.mubr.f32.mxu0 0.0
    %427 = vmatmul.mubr.f32.gmra.mxu0 %v337
    %v428 = vpop.f32.mrf.mxu0
    %v429 = vadd.f32 %v360, %v428
    %v430 = vpop.f32.mrf.mxu0
    %431 = vmatprep.mubr.f32.mxu0 0.0
    %432 = vmatmul.mubr.f32.gmra.mxu0 %v338
    %v433 = vpop.f32.mrf.mxu0
    %v434 = vadd.f32 %v360, %v433
    %v435 = vpop.f32.mrf.mxu0
    %436 = vdwg.mxu0
    %v437 = vmul.f32 %v429, 0.5
    %v438 = vmul.f32 %v434, 0.5
    %v439 = vmul.f32 %v429, 0.70710677
    %v440 = vmul.f32 %v434, 0.70710677
    %v441 = verf.f32.pop %v439
    %v442 = verf.f32.pop %v440
    %v443 = vadd.f32 %v441, 1.0
    %v444 = vadd.f32 %v442, 1.0
    %v445 = vmul.f32 %v437, %v443
    %v446 = vmul.f32 %v438, %v444
    %v447 = vld [vmem:[#allocation10] sm:$0xff]
    %v448 = vld [vmem:[#allocation10 + $0x8] sm:$0xff]
    %v449 = vld [vmem:[#allocation10 + $0x10] sm:$0xff]
    %v450 = vld [vmem:[#allocation10 + $0x18] sm:$0xff]
    %v451 = vld [vmem:[#allocation10 + $0x20] sm:$0xff]
    %v452 = vld [vmem:[#allocation10 + $0x28] sm:$0xff]
    %v453 = vld [vmem:[#allocation10 + $0x30] sm:$0xff]
    %v454 = vld [vmem:[#allocation10 + $0x38] sm:$0xff]
    %v455 = vld [vmem:[#allocation10 + $0x40] sm:$0xff]
    %v456 = vld [vmem:[#allocation10 + $0x48] sm:$0xff]
    %v457 = vld [vmem:[#allocation10 + $0x50] sm:$0xff]
    %v458 = vld [vmem:[#allocation10 + $0x58] sm:$0xff]
    %v459 = vld [vmem:[#allocation10 + $0x60] sm:$0xff]
    %v460 = vld [vmem:[#allocation10 + $0x68] sm:$0xff]
    %v461 = vld [vmem:[#allocation10 + $0x70] sm:$0xff]
    %v462 = vld [vmem:[#allocation10 + $0x78] sm:$0xff]
    %v463 = vld [vmem:[%s8] sm:$0x1]
    %v465 = vlaneseq
    %v466 = vshrl.u32 %v465, 7
    %v467 = vsub.s32 0, %v466
    %v468 = vrot.slane %v463, %v467
    %470 = vmatprep.subr.mxu0 0.0
    %471 = vmatpush1.msra.mxu0 %v462
    %472 = vmatprep.subr.mxu0 0.0
    %473 = vmatpush1.msra.mxu0 %v461
    %474 = vmatprep.subr.mxu0 0.0
    %475 = vmatpush1.msra.mxu0 %v460
    %476 = vmatprep.subr.mxu0 0.0
    %477 = vmatpush1.msra.mxu0 %v459
    %478 = vmatprep.subr.mxu0 0.0
    %479 = vmatpush1.msra.mxu0 %v458
    %480 = vmatprep.subr.mxu0 0.0
    %481 = vmatpush1.msra.mxu0 %v457
    %482 = vmatprep.subr.mxu0 0.0
    %483 = vmatpush1.msra.mxu0 %v456
    %484 = vmatprep.subr.mxu0 0.0
    %485 = vmatpush1.msra.mxu0 %v455
    %486 = vmatprep.subr.mxu0 0.0
    %487 = vmatpush1.msra.mxu0 %v454
    %488 = vmatprep.subr.mxu0 0.0
    %489 = vmatpush1.msra.mxu0 %v453
    %490 = vmatprep.subr.mxu0 0.0
    %491 = vmatpush1.msra.mxu0 %v452
    %492 = vmatprep.subr.mxu0 0.0
    %493 = vmatpush1.msra.mxu0 %v451
    %494 = vmatprep.subr.mxu0 0.0
    %495 = vmatpush1.msra.mxu0 %v450
    %496 = vmatprep.subr.mxu0 0.0
    %497 = vmatpush1.msra.mxu0 %v449
    %498 = vmatprep.subr.mxu0 0.0
    %499 = vmatpush1.msra.mxu0 %v448
    %500 = vmatprep.subr.mxu0 0.0
    %501 = vmatpush1.msra.mxu0 %v447
    %502 = vmatprep.subr.mxu0 0.0
    %503 = vmatpush2.msra.mxu0 0.0
    %504 = vmatprep.subr.mxu0 0.0
    %505 = vmatpush2.msra.mxu0 0.0
    %506 = vmatprep.subr.mxu0 0.0
    %507 = vmatpush2.msra.mxu0 0.0
    %508 = vmatprep.subr.mxu0 0.0
    %509 = vmatpush2.msra.mxu0 0.0
    %510 = vmatprep.subr.mxu0 0.0
    %511 = vmatpush2.msra.mxu0 0.0
    %512 = vmatprep.subr.mxu0 0.0
    %513 = vmatpush2.msra.mxu0 0.0
    %514 = vmatprep.subr.mxu0 0.0
    %515 = vmatpush2.msra.mxu0 0.0
    %516 = vmatprep.subr.mxu0 0.0
    %517 = vmatpush2.msra.mxu0 0.0
    %518 = vmatprep.subr.mxu0 0.0
    %519 = vmatpush2.msra.mxu0 0.0
    %520 = vmatprep.subr.mxu0 0.0
    %521 = vmatpush2.msra.mxu0 0.0
    %522 = vmatprep.subr.mxu0 0.0
    %523 = vmatpush2.msra.mxu0 0.0
    %524 = vmatprep.subr.mxu0 0.0
    %525 = vmatpush2.msra.mxu0 0.0
    %526 = vmatprep.subr.mxu0 0.0
    %527 = vmatpush2.msra.mxu0 0.0
    %528 = vmatprep.subr.mxu0 0.0
    %529 = vmatpush2.msra.mxu0 0.0
    %530 = vmatprep.subr.mxu0 0.0
    %531 = vmatpush2.msra.mxu0 0.0
    %532 = vmatprep.subr.mxu0 0.0
    %533 = vmatpush2.msra.mxu0 0.0
    %534 = vmatprep.mubr.f32.mxu0 0.0
    %535 = vmatmul.mubr.f32.gmra.mxu0 %v445
    %v536 = vpop.f32.mrf.mxu0
    %v537 = vadd.f32 %v468, %v536
    %v538 = vpop.f32.mrf.mxu0
    %539 = vmatprep.mubr.f32.mxu0 0.0
    %540 = vmatmul.mubr.f32.gmra.mxu0 %v446
    %v541 = vpop.f32.mrf.mxu0
    %v542 = vadd.f32 %v468, %v541
    %v543 = vpop.f32.mrf.mxu0
    %544 = vdwg.mxu0
    %v545 = vmul.f32 %v537, 0.5
    %v546 = vmul.f32 %v542, 0.5
    %v547 = vmul.f32 %v537, 0.70710677
    %v548 = vmul.f32 %v542, 0.70710677
    %v549 = verf.f32.pop %v547
    %v550 = verf.f32.pop %v548
    %v551 = vadd.f32 %v549, 1.0
    %v552 = vadd.f32 %v550, 1.0
    %v553 = vmul.f32 %v545, %v551
    %v554 = vmul.f32 %v546, %v552
    %v555 = vld [vmem:[#allocation11] sm:$0xff]
    %v556 = vld [vmem:[#allocation11 + $0x8] sm:$0xff]
    %v557 = vld [vmem:[#allocation11 + $0x10] sm:$0xff]
    %v558 = vld [vmem:[#allocation11 + $0x18] sm:$0xff]
    %v559 = vld [vmem:[#allocation11 + $0x20] sm:$0xff]
    %v560 = vld [vmem:[#allocation11 + $0x28] sm:$0xff]
    %v561 = vld [vmem:[#allocation11 + $0x30] sm:$0xff]
    %v562 = vld [vmem:[#allocation11 + $0x38] sm:$0xff]
    %v563 = vld [vmem:[#allocation11 + $0x40] sm:$0xff]
    %v564 = vld [vmem:[#allocation11 + $0x48] sm:$0xff]
    %v565 = vld [vmem:[#allocation11 + $0x50] sm:$0xff]
    %v566 = vld [vmem:[#allocation11 + $0x58] sm:$0xff]
    %v567 = vld [vmem:[#allocation11 + $0x60] sm:$0xff]
    %v568 = vld [vmem:[#allocation11 + $0x68] sm:$0xff]
    %v569 = vld [vmem:[#allocation11 + $0x70] sm:$0xff]
    %v570 = vld [vmem:[#allocation11 + $0x78] sm:$0xff]
    %v571 = vld [vmem:[%s10] sm:$0x1]
    %v573 = vlaneseq
    %v574 = vshrl.u32 %v573, 7
    %v575 = vsub.s32 0, %v574
    %v576 = vrot.slane %v571, %v575
    %578 = vmatprep.subr.mxu0 0.0
    %579 = vmatpush1.msra.mxu0 %v570
    %580 = vmatprep.subr.mxu0 0.0
    %581 = vmatpush1.msra.mxu0 %v569
    %582 = vmatprep.subr.mxu0 0.0
    %583 = vmatpush1.msra.mxu0 %v568
    %584 = vmatprep.subr.mxu0 0.0
    %585 = vmatpush1.msra.mxu0 %v567
    %586 = vmatprep.subr.mxu0 0.0
    %587 = vmatpush1.msra.mxu0 %v566
    %588 = vmatprep.subr.mxu0 0.0
    %589 = vmatpush1.msra.mxu0 %v565
    %590 = vmatprep.subr.mxu0 0.0
    %591 = vmatpush1.msra.mxu0 %v564
    %592 = vmatprep.subr.mxu0 0.0
    %593 = vmatpush1.msra.mxu0 %v563
    %594 = vmatprep.subr.mxu0 0.0
    %595 = vmatpush1.msra.mxu0 %v562
    %596 = vmatprep.subr.mxu0 0.0
    %597 = vmatpush1.msra.mxu0 %v561
    %598 = vmatprep.subr.mxu0 0.0
    %599 = vmatpush1.msra.mxu0 %v560
    %600 = vmatprep.subr.mxu0 0.0
    %601 = vmatpush1.msra.mxu0 %v559
    %602 = vmatprep.subr.mxu0 0.0
    %603 = vmatpush1.msra.mxu0 %v558
    %604 = vmatprep.subr.mxu0 0.0
    %605 = vmatpush1.msra.mxu0 %v557
    %606 = vmatprep.subr.mxu0 0.0
    %607 = vmatpush1.msra.mxu0 %v556
    %608 = vmatprep.subr.mxu0 0.0
    %609 = vmatpush1.msra.mxu0 %v555
    %610 = vmatprep.subr.mxu0 0.0
    %611 = vmatpush2.msra.mxu0 0.0
    %612 = vmatprep.subr.mxu0 0.0
    %613 = vmatpush2.msra.mxu0 0.0
    %614 = vmatprep.subr.mxu0 0.0
    %615 = vmatpush2.msra.mxu0 0.0
    %616 = vmatprep.subr.mxu0 0.0
    %617 = vmatpush2.msra.mxu0 0.0
    %618 = vmatprep.subr.mxu0 0.0
    %619 = vmatpush2.msra.mxu0 0.0
    %620 = vmatprep.subr.mxu0 0.0
    %621 = vmatpush2.msra.mxu0 0.0
    %622 = vmatprep.subr.mxu0 0.0
    %623 = vmatpush2.msra.mxu0 0.0
    %624 = vmatprep.subr.mxu0 0.0
    %625 = vmatpush2.msra.mxu0 0.0
    %626 = vmatprep.subr.mxu0 0.0
    %627 = vmatpush2.msra.mxu0 0.0
    %628 = vmatprep.subr.mxu0 0.0
    %629 = vmatpush2.msra.mxu0 0.0
    %630 = vmatprep.subr.mxu0 0.0
    %631 = vmatpush2.msra.mxu0 0.0
    %632 = vmatprep.subr.mxu0 0.0
    %633 = vmatpush2.msra.mxu0 0.0
    %634 = vmatprep.subr.mxu0 0.0
    %635 = vmatpush2.msra.mxu0 0.0
    %636 = vmatprep.subr.mxu0 0.0
    %637 = vmatpush2.msra.mxu0 0.0
    %638 = vmatprep.subr.mxu0 0.0
    %639 = vmatpush2.msra.mxu0 0.0
    %640 = vmatprep.subr.mxu0 0.0
    %641 = vmatpush2.msra.mxu0 0.0
    %642 = vmatprep.mubr.f32.mxu0 0.0
    %643 = vmatmul.mubr.f32.gmra.mxu0 %v553
    %v644 = vpop.f32.mrf.mxu0
    %v645 = vadd.f32 %v576, %v644
    %v646 = vpop.f32.mrf.mxu0
    %647 = vmatprep.mubr.f32.mxu0 0.0
    %648 = vmatmul.mubr.f32.gmra.mxu0 %v554
    %v649 = vpop.f32.mrf.mxu0
    %v650 = vadd.f32 %v576, %v649
    %v651 = vpop.f32.mrf.mxu0
    %652 = vdwg.mxu0
    %653 = vst [vmem:[#allocation13] sm:$0xff] %v645
    %654 = vst [vmem:[#allocation13 + $0x8] sm:$0xff] %v650
    // Predicated region
    $region70: #{tpu_custom_call.1} parent=1 // pred_check
      _
    $region71: #{tpu_custom_call.1} parent=1 // pred_check_branch
      %656 = sbr.rel (0) target = $region73
    $region72: #{tpu_custom_call.1} parent=1 // pred_region
      %s658 = ssub.s32 256, 32
      %659 = vsyncadd [#allocation4], %s658
      %s660 = sshll.u32 [#allocation13], 4
      %s661 = int_to_ptr.vmem [resolvable:$true] %s660
      %666 = dma.vmem_to_hbm [thread:$0]  %s661, 32, %s11, [#allocation4], 32, 32, 2
    $region73: #{tpu_custom_call.1} parent=1 // pred_fallthru
      _
    // Predicated region
    $region74: #{tpu_custom_call.1} parent=1 // pred_check
      _
    $region75: #{tpu_custom_call.1} parent=1 // pred_check_branch
      %668 = sbr.rel (0) target = $region77
    $region76: #{tpu_custom_call.1} parent=1 // pred_region
      %669 = dma.done [#allocation4], 256
    $region77: #{tpu_custom_call.1} parent=1 // pred_fallthru
      _
    %670 = vsyncpa [#allocation3], 1
    %671 = vsyncpa [#allocation6], 1
    %672 = vsyncpa [#allocation9], 1
    %673 = vsyncpa [#allocation12], 1
    %674 = vsyncpa [#allocation4], 1

</llo_original>
